<compile_context>
chip_gen: v6e
topology: v6e:2x2x1
jax: 0.10.0
libtpu: 0.0.40
codegen_flags: <defaults>
</compile_context>

<pallas_src>
import functools

import jax
import jax.numpy as jnp
from jax.experimental import pallas as pl
from jax.experimental.pallas import tpu as pltpu


def _round_up(a, b):
    return ((a + b - 1) // b) * b


def _kernel(x1_ref, x2_ref, r_ref, wd_ref, u_ref, c_ref, out_ref, *, fuse):
    # Upcast to f32 (no-op for f32 inputs; keeps bf16 inputs accurate).
    x1 = x1_ref[...].astype(jnp.float32)
    x2 = x2_ref[...].astype(jnp.float32)
    r = r_ref[...].astype(jnp.float32)
    if fuse:
        # node_dim == pair_dim: one fused VPU multiply-add + a single lane
        # reduction per row (half the XLU pushes of two separate reductions).
        p = x1 * x2 * wd_ref[...] + r * u_ref[...]
        t = jnp.sum(p, axis=-1, keepdims=True)                   # [tile, 1]
    else:
        t = (jnp.sum(x1 * x2 * wd_ref[...], axis=-1, keepdims=True)
             + jnp.sum(r * u_ref[...], axis=-1, keepdims=True))  # [tile, 1]
    out_ref[...] = (t + c_ref[0]).astype(out_ref.dtype)


@functools.partial(jax.jit, static_argnames=("tile_n",))
def diagonal_bilinear_pt(x1, x2, r, w_diag, w_pt, b_pt, v, b_v, *, tile_n=None):
    """x1, x2: [B, L, node_dim]; r: [B, L, pair_dim] -> out: [B, L, 1] (eval mode)."""
    B, L, node_dim = x1.shape
    pair_dim = r.shape[-1]
    N = B * L
    f32 = jnp.float32

    # Eval-mode fold of the pair branch (Dropout == identity):
    #   u = v @ W_pt  (shape [1, pair_dim]);  c = b_pt . v + b_v  (scalar)
    u = jnp.dot(v.astype(f32), w_pt.astype(f32))                  # [1, pair_dim]
    c = (jnp.dot(b_pt.astype(f32), v.astype(f32)[0])
         + b_v.astype(f32)[0]).reshape(1)                         # [1] -> SMEM
    wd = w_diag.astype(f32)                                       # [1, node_dim]

    # Flat row-major views (free reshapes, no HBM copies, no padding).
    x1f = x1.reshape(N, node_dim)
    x2f = x2.reshape(N, node_dim)
    rf = r.reshape(N, pair_dim)

    # ---------------- row-tile sizing (all static Python ints) ----------------
    row_bytes = 2 * node_dim * x1.dtype.itemsize + pair_dim * r.dtype.itemsize

    def step_vmem_bytes(rows):
        # Real on-chip footprint: last dim padded to 128 lanes, second-to-last
        # to 8 sublanes, x2 buffers per pipelined operand, + resident weights.
        rows8 = _round_up(rows, 8)
        in_b = (2 * rows8 * _round_up(node_dim, 128) * x1.dtype.itemsize
                + rows8 * _round_up(pair_dim, 128) * r.dtype.itemsize)
        out_b = rows8 * 128 * x1.dtype.itemsize        # (rows, 1) pads to 128 lanes
        wgt_b = 8 * (_round_up(node_dim, 128) + _round_up(pair_dim, 128)) * 4
        return 2 * (in_b + out_b + wgt_b)

    # Per-generation scoped-VMEM budget: ~75% of physical, capped at 100 MiB
    # (=> ~48 MiB on v7x's 64 MiB/TC, ~96 MiB on v5e/v6e's 128 MiB).
    try:
        phys_vmem = int(pltpu.get_tpu_info().vmem_capacity_bytes)
    except Exception:
        phys_vmem = 64 * 1024 * 1024                   # conservative (v7x per-core)
    budget = min((phys_vmem * 3) // 4, 100 * 1024 * 1024)

    if tile_n is None:
        # ~4 MiB of streamed input per grid step (~10K rows for D=32 f32) so the
        # ~0.35 us per-step overhead is amortized on every generation.
        target_step_bytes = 4 * 1024 * 1024
        tile = (target_step_bytes // row_bytes) // 8 * 8
    else:
        tile = (int(tile_n) // 8) * 8
    tile = max(8, min(tile, _round_up(N, 8)))
    while tile > 8 and step_vmem_bytes(tile) > budget:
        tile = max(8, ((tile // 2) // 8) * 8)

    n_tiles = pl.cdiv(N, tile)
    if tile_n is None and 2 <= n_tiles <= 8 and n_tiles % 2 == 1:
        # v7x megacore: keep the step count even so the "parallel" axis shards
        # evenly across the 2 TensorCores (no effect on v5e/v6e, still fits VMEM).
        tile = max(8, _round_up(-(-N // (n_tiles + 1)), 8))
        n_tiles = pl.cdiv(N, tile)

    # Output allocated padded to whole blocks: output blocks are always full and
    # in-bounds; only the *input* final block is partial (OOB reads land in rows
    # >= N, which out[:N] discards; all reductions are strictly per-row).
    N_out = n_tiles * tile

    vmem_limit = int(min(budget, max(32 * 1024 * 1024,
                                     (step_vmem_bytes(tile) * 5) // 4)))

    kernel = functools.partial(_kernel, fuse=(node_dim == pair_dim))

    out = pl.pallas_call(
        kernel,
        out_shape=jax.ShapeDtypeStruct((N_out, 1), x1.dtype),
        grid_spec=pltpu.PrefetchScalarGridSpec(
            num_scalar_prefetch=0,
            grid=(n_tiles,),
            in_specs=[
                pl.BlockSpec((tile, node_dim), lambda i: (i, 0)),   # x1
                pl.BlockSpec((tile, node_dim), lambda i: (i, 0)),   # x2
                pl.BlockSpec((tile, pair_dim), lambda i: (i, 0)),   # r
                pl.BlockSpec((1, node_dim), lambda i: (0, 0)),      # w_diag (resident)
                pl.BlockSpec((1, pair_dim), lambda i: (0, 0)),      # u = v @ W_pt (resident)
                pl.BlockSpec(memory_space=pltpu.MemorySpace.SMEM),  # c scalar
            ],
            out_specs=pl.BlockSpec((tile, 1), lambda i: (i, 0)),
        ),
        compiler_params=pltpu.CompilerParams(
            dimension_semantics=("parallel",),
            vmem_limit_bytes=vmem_limit),
    )(x1f, x2f, rf, wd, u, c)

    return out[:N].reshape(B, L, 1)


def _reference(x1, x2, r, w_diag, w_pt, b_pt, v, b_v):
    term1 = jnp.einsum("bld,od->blo", x1 * x2, w_diag)
    r_t = jnp.einsum("bld,od->blo", r, w_pt) + b_pt
    term2 = jnp.einsum("bld,od->blo", r_t, v) + b_v
    return term1 + term2


def _make_case(key, B, L, node_dim, pair_dim):
    k = jax.random.split(key, 8)
    x1 = jax.random.normal(k[0], (B, L, node_dim), jnp.float32)
    x2 = jax.random.normal(k[1], (B, L, node_dim), jnp.float32)
    r = jax.random.normal(k[2], (B, L, pair_dim), jnp.float32)

    # nn.Linear-style uniform(-1/sqrt(fan_in), 1/sqrt(fan_in)) init
    def lin_w(kk, out_f, in_f):
        b = 1.0 / jnp.sqrt(jnp.float32(in_f))
        return jax.random.uniform(kk, (out_f, in_f), jnp.float32, -b, b)

    bp = 1.0 / jnp.sqrt(jnp.float32(pair_dim))
    w_diag = lin_w(k[3], 1, node_dim)                 # W_diag.weight   [1, node_dim]
    w_pt = lin_w(k[4], pair_dim, pair_dim)            # transform[0].weight
    b_pt = jax.random.uniform(k[5], (pair_dim,), jnp.float32, -bp, bp)
    v = lin_w(k[6], 1, pair_dim)                      # V.weight        [1, pair_dim]
    b_v = jax.random.uniform(k[7], (1,), jnp.float32, -bp, bp)
    return (x1, x2, r, w_diag, w_pt, b_pt, v, b_v)


if __name__ == "__main__":
    key = jax.random.PRNGKey(0)
    cases = [
        # (B, L, node_dim, pair_dim, tile_n override)
        (2, 8, 32, 32, None),      # primary small case
        (2, 555, 32, 32, 256),     # multi-step grid + partial final input block
        (3, 7, 24, 40, None),      # node_dim != pair_dim (two-reduction path)
    ]
    keys = jax.random.split(key, len(cases))
    for (B, L, nd, pd, tn), kk in zip(cases, keys):
        args = _make_case(kk, B, L, nd, pd)
        out = diagonal_bilinear_pt(*args, tile_n=tn)
        out = jax.block_until_ready(out)
        ref = _reference(*args)
        assert out.shape == (B, L, 1), (out.shape, (B, L, 1))
        # the eval-mode fold reassociates the pair-transform reduction -> small fp slack
        assert jnp.allclose(out, ref, atol=2e-4, rtol=2e-4), (
            "mismatch vs reference for case "
            f"{(B, L, nd, pd, tn)}: max abs err {jnp.max(jnp.abs(out - ref))}")

    print("KERNEL_OK")
</pallas_src>

<mosaic_0001>
module attributes {stable_mosaic.version = 11 : i64} {
  func.func @_kernel(%arg0: i32, %arg1: memref<16x32xf32, #tpu.memory_space<vmem>>, %arg2: memref<16x32xf32, #tpu.memory_space<vmem>>, %arg3: memref<16x32xf32, #tpu.memory_space<vmem>>, %arg4: memref<1x32xf32, #tpu.memory_space<vmem>>, %arg5: memref<1x32xf32, #tpu.memory_space<vmem>>, %arg6: memref<1xf32, #tpu.memory_space<smem>>, %arg7: memref<16x1xf32, #tpu.memory_space<vmem>>) attributes {dimension_semantics = [#tpu.dimension_semantics<parallel>], iteration_bounds = array<i64: 1>, scalar_prefetch = 0 : i64, scratch_operands = 0 : i64, tpu.core_type = #tpu.core_type<tc>, window_params = [{transform_indices = @transform_0, window_bounds = array<i64: 16, 32>}, {transform_indices = @transform_1, window_bounds = array<i64: 16, 32>}, {transform_indices = @transform_2, window_bounds = array<i64: 16, 32>}, {pipeline_mode = #tpu.pipeline_mode<synchronous>, transform_indices = @transform_3, window_bounds = array<i64: 1, 32>}, {pipeline_mode = #tpu.pipeline_mode<synchronous>, transform_indices = @transform_4, window_bounds = array<i64: 1, 32>}, {transform_indices = @transform_5, window_bounds = array<i64: 1>}, {transform_indices = @transform_6, window_bounds = array<i64: 16, 1>}]} {
    %c0 = arith.constant 0 : index
    %c0_0 = arith.constant 0 : index
    %0 = vector.load %arg1[%c0, %c0_0] : memref<16x32xf32, #tpu.memory_space<vmem>>, vector<16x32xf32>
    %c0_1 = arith.constant 0 : index
    %c0_2 = arith.constant 0 : index
    %1 = vector.load %arg2[%c0_1, %c0_2] : memref<16x32xf32, #tpu.memory_space<vmem>>, vector<16x32xf32>
    %c0_3 = arith.constant 0 : index
    %c0_4 = arith.constant 0 : index
    %2 = vector.load %arg3[%c0_3, %c0_4] : memref<16x32xf32, #tpu.memory_space<vmem>>, vector<16x32xf32>
    %3 = arith.mulf %0, %1 : vector<16x32xf32>
    %c0_5 = arith.constant 0 : index
    %c0_6 = arith.constant 0 : index
    %4 = vector.load %arg4[%c0_5, %c0_6] : memref<1x32xf32, #tpu.memory_space<vmem>>, vector<1x32xf32>
    %5 = vector.broadcast %4 : vector<1x32xf32> to vector<16x32xf32>
    %6 = arith.mulf %3, %5 : vector<16x32xf32>
    %c0_7 = arith.constant 0 : index
    %c0_8 = arith.constant 0 : index
    %7 = vector.load %arg5[%c0_7, %c0_8] : memref<1x32xf32, #tpu.memory_space<vmem>>, vector<1x32xf32>
    %8 = vector.broadcast %7 : vector<1x32xf32> to vector<16x32xf32>
    %9 = arith.mulf %2, %8 : vector<16x32xf32>
    %10 = arith.addf %6, %9 : vector<16x32xf32>
    %cst = arith.constant dense<0.000000e+00> : vector<16xf32>
    %11 = vector.multi_reduction <add>, %10, %cst [1] : vector<16x32xf32> to vector<16xf32>
    %12 = vector.shape_cast %11 : vector<16xf32> to vector<16x1xf32>
    %c0_9 = arith.constant 0 : index
    %13 = memref.load %arg6[%c0_9] : memref<1xf32, #tpu.memory_space<smem>>
    %14 = vector.broadcast %13 : f32 to vector<16x1xf32>
    %15 = arith.addf %12, %14 : vector<16x1xf32>
    %c0_10 = arith.constant 0 : index
    %c0_11 = arith.constant 0 : index
    %16 = vector.load %arg7[%c0_10, %c0_11] : memref<16x1xf32, #tpu.memory_space<vmem>>, vector<16x1xf32>
    tpu.vector_store %arg7[%c0_10, %c0_11], %15 {strides = array<i32>} : memref<16x1xf32, #tpu.memory_space<vmem>>, vector<16x1xf32>,
    return
  }
  func.func @transform_0(%arg0: i32) -> (i32, i32) {
    %c0_i32 = arith.constant 0 : i32
    %c0_i32_0 = arith.constant 0 : i32
    return %arg0, %c0_i32 : i32, i32
  }
  func.func @transform_1(%arg0: i32) -> (i32, i32) {
    %c0_i32 = arith.constant 0 : i32
    %c0_i32_0 = arith.constant 0 : i32
    return %arg0, %c0_i32 : i32, i32
  }
  func.func @transform_2(%arg0: i32) -> (i32, i32) {
    %c0_i32 = arith.constant 0 : i32
    %c0_i32_0 = arith.constant 0 : i32
    return %arg0, %c0_i32 : i32, i32
  }
  func.func @transform_3(%arg0: i32) -> (i32, i32) {
    %c0_i32 = arith.constant 0 : i32
    %c0_i32_0 = arith.constant 0 : i32
    %c0_i32_1 = arith.constant 0 : i32
    return %c0_i32, %c0_i32_0 : i32, i32
  }
  func.func @transform_4(%arg0: i32) -> (i32, i32) {
    %c0_i32 = arith.constant 0 : i32
    %c0_i32_0 = arith.constant 0 : i32
    %c0_i32_1 = arith.constant 0 : i32
    return %c0_i32, %c0_i32_0 : i32, i32
  }
  func.func @transform_5(%arg0: i32) -> i32 {
    %c0_i32 = arith.constant 0 : i32
    %c0_i32_0 = arith.constant 0 : i32
    return %c0_i32 : i32
  }
  func.func @transform_6(%arg0: i32) -> (i32, i32) {
    %c0_i32 = arith.constant 0 : i32
    %c0_i32_0 = arith.constant 0 : i32
    return %arg0, %c0_i32 : i32, i32
  }
}

</mosaic_0001>

<llo_original>
// kernel: diagonal_bilinear_pt.1
$region0: #{diagonal_bilinear_pt.1}
  #allocation0 [shape = 'u32[]', space=smem, size = 0x4, offset = 0x4, fixed_abs, tag = 'smem constant byte address 0x4 - core index']
  #allocation1 [shape = 'u32[144,128]{1,0:T(1,128)}', space=vmem, size = 0x12000, scoped, tag = 'internal scratch']
  #allocation2 [shape = 'f32[1]{0:T(128)S(6)}', space=smem, size = 0x200, scoped, tag = 'scoped memory for diagonal_bilinear_pt.1']
  %s0 = inlined_call_operand.vmem [shape: f32[16,32], index: 0, kind: input, shape index: {}]
  %s1 = inlined_call_operand.vmem [shape: f32[16,32], index: 1, kind: input, shape index: {}]
  %s2 = inlined_call_operand.vmem [shape: f32[16,32], index: 2, kind: input, shape index: {}]
  %s3 = inlined_call_operand.vmem [shape: f32[1,32], index: 3, kind: input, shape index: {}]
  %s4 = inlined_call_operand.vmem [shape: f32[1,32], index: 4, kind: input, shape index: {}]
  %s5 = inlined_call_operand.<no memory space> [shape: f32[1], index: 5, kind: input, shape index: {}]
  %s6 = inlined_call_operand.vmem [shape: f32[16,1], index: 6, kind: output, shape index: {}]
  %s7 = sld [smem:[#allocation0]]
  $region34: #{diagonal_bilinear_pt.1} parent=0
    _
  %s9 = ssub.s32 1, %s7
  %s10 = scalar_select 0, %s9, %s7
  %11 = sst [smem:[#allocation2]] %s5
  // Predicated region
  $region2: #{diagonal_bilinear_pt.1} parent=0 // pred_check
    _
  $region3: #{diagonal_bilinear_pt.1} parent=0 // pred_check_branch
    %13 = sbr.rel (0) target = $region5
  $region4: #{diagonal_bilinear_pt.1} parent=0 // pred_region
    _
  $region5: #{diagonal_bilinear_pt.1} parent=0 // pred_fallthru
    _
  // Predicated region
  $region6: #{diagonal_bilinear_pt.1} parent=0 // pred_check
    _
  $region7: #{diagonal_bilinear_pt.1} parent=0 // pred_check_branch
    %15 = sbr.rel (0) target = $region9
  $region8: #{diagonal_bilinear_pt.1} parent=0 // pred_region
    _
  $region9: #{diagonal_bilinear_pt.1} parent=0 // pred_fallthru
    _
  // Predicated region
  $region10: #{diagonal_bilinear_pt.1} parent=0 // pred_check
    _
  $region11: #{diagonal_bilinear_pt.1} parent=0 // pred_check_branch
    %17 = sbr.rel (0) target = $region13
  $region12: #{diagonal_bilinear_pt.1} parent=0 // pred_region
    _
  $region13: #{diagonal_bilinear_pt.1} parent=0 // pred_fallthru
    _
  // Predicated region
  $region14: #{diagonal_bilinear_pt.1} parent=0 // pred_check
    _
  $region15: #{diagonal_bilinear_pt.1} parent=0 // pred_check_branch
    %19 = sbr.rel (0) target = $region17
  $region16: #{diagonal_bilinear_pt.1} parent=0 // pred_region
    _
  $region17: #{diagonal_bilinear_pt.1} parent=0 // pred_fallthru
    _
  // Predicated region
  $region18: #{diagonal_bilinear_pt.1} parent=0 // pred_check
    _
  $region19: #{diagonal_bilinear_pt.1} parent=0 // pred_check_branch
    %21 = sbr.rel (0) target = $region21
  $region20: #{diagonal_bilinear_pt.1} parent=0 // pred_region
    _
  $region21: #{diagonal_bilinear_pt.1} parent=0 // pred_fallthru
    _
  // Predicated region
  $region22: #{diagonal_bilinear_pt.1} parent=0 // pred_check
    _
  $region23: #{diagonal_bilinear_pt.1} parent=0 // pred_check_branch
    %23 = sbr.rel (0) target = $region25
  $region24: #{diagonal_bilinear_pt.1} parent=0 // pred_region
    _
  $region25: #{diagonal_bilinear_pt.1} parent=0 // pred_fallthru
    _
  %v24 = vld [vmem:[%s0] sm:$0xff]
  %v25 = vld [vmem:[%s0 + $0x8] sm:$0xff]
  %v26 = vld [vmem:[%s1] sm:$0xff]
  %v27 = vld [vmem:[%s1 + $0x8] sm:$0xff]
  %v28 = vld [vmem:[%s2] sm:$0xff]
  %v29 = vld [vmem:[%s2 + $0x8] sm:$0xff]
  %v30 = vmul.f32 %v24, %v26
  %v31 = vmul.f32 %v25, %v27
  %v32 = vld [vmem:[%s3] sm:$0x1]
  %v34 = vlaneseq
  %v35 = vshrl.u32 %v34, 7
  %v36 = vsub.s32 0, %v35
  %v37 = vrot.slane %v32, %v36
  %v39 = vmul.f32 %v30, %v37
  %v40 = vmul.f32 %v31, %v37
  %v41 = vld [vmem:[%s4] sm:$0x1]
  %v43 = vlaneseq
  %v44 = vshrl.u32 %v43, 7
  %v45 = vsub.s32 0, %v44
  %v46 = vrot.slane %v41, %v45
  %v48 = vmul.f32 %v28, %v46
  %v49 = vmul.f32 %v29, %v46
  %v50 = vadd.f32 %v39, %v48
  %v51 = vadd.f32 %v40, %v49
  %vm52 = vcmask 261120
  %v53 = vsel %vm52, %v50, 0.0
  %54 = vadd.xlane.f32.xlu0 %v53
  %v55 = vpop.xlane.xlu0 %54
  %v56 = vsel %vm52, %v51, 0.0
  %57 = vadd.xlane.f32.xlu0 %v56
  %v58 = vpop.xlane.xlu0 %57
  %s59 = sld [smem:[#allocation2]]
  %v60 = vstv %s59
  %v61 = vadd.f32 %v55, %v60
  %v62 = vadd.f32 %v58, %v60
  %vm63 = vcmask 7168
  %64 = vst.msk [vmem:[%s6] sm:$0xff] %vm63, %v61
  %65 = vst.msk [vmem:[%s6 + $0x8] sm:$0xff] %vm63, %v62
  // Predicated region
  $region26: #{diagonal_bilinear_pt.1} parent=0 // pred_check
    _
  $region27: #{diagonal_bilinear_pt.1} parent=0 // pred_check_branch
    %67 = sbr.rel (0) target = $region29
  $region28: #{diagonal_bilinear_pt.1} parent=0 // pred_region
    _
  $region29: #{diagonal_bilinear_pt.1} parent=0 // pred_fallthru
    _
  // Predicated region
  $region30: #{diagonal_bilinear_pt.1} parent=0 // pred_check
    _
  $region31: #{diagonal_bilinear_pt.1} parent=0 // pred_check_branch
    %69 = sbr.rel (0) target = $region33
  $region32: #{diagonal_bilinear_pt.1} parent=0 // pred_region
    _
  $region33: #{diagonal_bilinear_pt.1} parent=0 // pred_fallthru
    _

</llo_original>
